<compile_context>
chip_gen: v7x
topology: tpu7x:2x2x1
jax: 0.10.0
libtpu: 0.0.40
codegen_flags: <defaults>
</compile_context>

<pallas_src>
import math

import jax
import jax.numpy as jnp
from jax.experimental import pallas as pl
from jax.experimental.pallas import tpu as pltpu


_INV_SQRT2 = 1.0 / math.sqrt(2.0)


def _round_up(x, m):
    return (x + m - 1) // m * m


def _critic_value_kernel(h_ref, w1_ref, b1_ref, w2m_ref, b2m_ref, out_ref):
    """h: (TB,E) compute dtype; w1: (E,E); b1,w2m: (1,E) f32; b2m: (1,1) SMEM; out: (TB,1) f32."""
    # Linear 1 on the MXU; f32 accumulation regardless of operand dtype.
    x = jnp.dot(h_ref[...], w1_ref[...], preferred_element_type=jnp.float32)
    x = x + b1_ref[...]

    # Exact GELU (matches torch.nn.GELU default), kept in f32.
    x = 0.5 * x * (1.0 + jax.lax.erf(x * jnp.float32(_INV_SQRT2)))

    # Folded output head: value = x @ mean(W2, axis=1) + mean(b2),
    # computed as a VPU multiply + lane reduce (second matmul eliminated).
    v = jnp.sum(x * w2m_ref[...], axis=-1, keepdims=True) + b2m_ref[0, 0]
    out_ref[...] = v.astype(out_ref.dtype)


def fold_critic_params(params, *, compute_dtype=jnp.float32):
    """Precompute the mean-folded output head once (not per forward call)."""
    return {
        "w1": params["w1"].astype(compute_dtype),
        "b1": params["b1"].astype(jnp.float32).reshape(1, -1),
        "w2_mean": jnp.mean(params["w2"].astype(jnp.float32), axis=1)[None, :],
        "b2_mean": jnp.mean(params["b2"].astype(jnp.float32)).reshape(1, 1),
    }


def critic_forward(obs, folded_params):
    hidden_state = obs["hidden_state"]            # (1, B, E) GRU hidden layout
    _, B, E = hidden_state.shape
    compute_dtype = folded_params["w1"].dtype
    itemsize = jnp.dtype(compute_dtype).itemsize

    # Batch tiling: a single tile if B is small, otherwise 512-row tiles
    # (multiple of 8 sublanes, 128-friendly) pipelined over a 'parallel' axis.
    if B <= 512:
        tb = _round_up(max(B, 8), 8)
        b_pad = tb
    else:
        tb = 512
        b_pad = _round_up(B, tb)
    grid = (b_pad // tb,)

    h = hidden_state
    if b_pad != B:
        h = jnp.pad(h, ((0, 0), (0, b_pad - B), (0, 0)))
    h = h.astype(compute_dtype)

    # Rough VMEM budget (double-buffered operands), clamped to v7x's 64 MiB.
    est = 2 * (E * E * itemsize + 2 * E * 4 + tb * E * itemsize + tb * 4)
    vmem_limit = int(min(64 << 20, max(16 << 20, 2 * est)))

    value_pad = pl.pallas_call(
        _critic_value_kernel,
        out_shape=jax.ShapeDtypeStruct((b_pad, 1), jnp.float32),
        grid=grid,
        in_specs=[
            # hidden_state read directly in (1, B, E) layout; leading dim squeezed.
            pl.BlockSpec((None, tb, E), lambda i: (0, i, 0)),
            # Weights / folded projection pinned to block (0,0): VMEM-resident.
            pl.BlockSpec((E, E), lambda i: (0, 0)),
            pl.BlockSpec((1, E), lambda i: (0, 0)),
            pl.BlockSpec((1, E), lambda i: (0, 0)),
            # Scalar mean(b2) lives in SMEM.
            pl.BlockSpec(memory_space=pltpu.MemorySpace.SMEM),
        ],
        out_specs=pl.BlockSpec((tb, 1), lambda i: (i, 0)),
        compiler_params=pltpu.CompilerParams(
            dimension_semantics=("parallel",),
            vmem_limit_bytes=vmem_limit,
        ),
    )(h, folded_params["w1"], folded_params["b1"],
      folded_params["w2_mean"], folded_params["b2_mean"])

    return value_pad[:B]


def init_params(key, embedding_dim, num_actions):
    """Deterministic init mimicking torch.nn.Linear (uniform +/- 1/sqrt(fan_in))."""
    k1, k2, k3, k4 = jax.random.split(key, 4)
    bound1 = 1.0 / math.sqrt(embedding_dim)
    w1 = jax.random.uniform(k1, (embedding_dim, embedding_dim), jnp.float32,
                            -bound1, bound1)
    b1 = jax.random.uniform(k2, (1, embedding_dim), jnp.float32, -bound1, bound1)
    bound2 = 1.0 / math.sqrt(embedding_dim)
    w2 = jax.random.uniform(k3, (embedding_dim, num_actions), jnp.float32,
                            -bound2, bound2)
    b2 = jax.random.uniform(k4, (1, num_actions), jnp.float32, -bound2, bound2)
    return {"w1": w1, "b1": b1, "w2": w2, "b2": b2}


def _reference(obs, params):
    h = obs["hidden_state"][0].astype(jnp.float32)
    x = h @ params["w1"] + params["b1"]
    x = jax.nn.gelu(x, approximate=False)
    logits = x @ params["w2"] + params["b2"]
    return jnp.mean(logits, axis=-1, keepdims=True)


if __name__ == "__main__":
    # Small shapes consistent with the module.
    p_net_num_nodes = 8        # num_actions = 8 (allow_revocable=False, allow_rejection=False)
    embedding_dim = 32
    batch = 2

    key = jax.random.PRNGKey(0)
    k_params, k_hidden = jax.random.split(key)
    params = init_params(k_params, embedding_dim, p_net_num_nodes)

    obs = {
        # GRU-style hidden state: (num_layers=1, batch, embedding_dim)
        "hidden_state": jax.random.normal(
            k_hidden, (1, batch, embedding_dim), jnp.float32
        ),
        # p_net / p_node_id / encoder_outputs / mask are unused by Critic's value.
    }

    ref = _reference(obs, params)

    # f32 path: matches the PyTorch semantics up to mean-fold summation order.
    folded_f32 = fold_critic_params(params, compute_dtype=jnp.float32)
    value = jax.block_until_ready(critic_forward(obs, folded_f32))
    assert value.shape == (batch, 1)
    assert jnp.allclose(value, ref, atol=1e-5, rtol=1e-5)

    # bf16 MXU-operand path (v6e/v7x throughput + halved W1 footprint);
    # elementwise math stays f32, only matmul-operand rounding differs.
    folded_bf16 = fold_critic_params(params, compute_dtype=jnp.bfloat16)
    value_bf16 = jax.block_until_ready(critic_forward(obs, folded_bf16))
    assert value_bf16.shape == (batch, 1)
    assert jnp.allclose(value_bf16, ref, atol=5e-2)

    print("KERNEL_OK")
</pallas_src>

<mosaic_0001>
module attributes {stable_mosaic.version = 11 : i64} {
  func.func @_critic_value_kernel(%arg0: i32, %arg1: memref<1x8x32xf32, #tpu.memory_space<vmem>>, %arg2: memref<32x32xf32, #tpu.memory_space<vmem>>, %arg3: memref<1x32xf32, #tpu.memory_space<vmem>>, %arg4: memref<1x32xf32, #tpu.memory_space<vmem>>, %arg5: memref<1x1xf32, #tpu.memory_space<smem>>, %arg6: memref<8x1xf32, #tpu.memory_space<vmem>>) attributes {dimension_semantics = [#tpu.dimension_semantics<parallel>], iteration_bounds = array<i64: 1>, scalar_prefetch = 0 : i64, scratch_operands = 0 : i64, tpu.core_type = #tpu.core_type<tc>, window_params = [{transform_indices = @transform_0, window_bounds = array<i64: 1, 8, 32>}, {pipeline_mode = #tpu.pipeline_mode<synchronous>, transform_indices = @transform_1, window_bounds = array<i64: 32, 32>}, {pipeline_mode = #tpu.pipeline_mode<synchronous>, transform_indices = @transform_2, window_bounds = array<i64: 1, 32>}, {pipeline_mode = #tpu.pipeline_mode<synchronous>, transform_indices = @transform_3, window_bounds = array<i64: 1, 32>}, {transform_indices = @transform_4, window_bounds = array<i64: 1, 1>}, {transform_indices = @transform_5, window_bounds = array<i64: 8, 1>}]} {
    %c0 = arith.constant 0 : index
    %c0_0 = arith.constant 0 : index
    %c0_1 = arith.constant 0 : index
    %0 = vector.load %arg1[%c0, %c0_0, %c0_1] : memref<1x8x32xf32, #tpu.memory_space<vmem>>, vector<1x8x32xf32>
    %1 = vector.shape_cast %0 : vector<1x8x32xf32> to vector<8x32xf32>
    %c0_2 = arith.constant 0 : index
    %c0_3 = arith.constant 0 : index
    %2 = vector.load %arg2[%c0_2, %c0_3] : memref<32x32xf32, #tpu.memory_space<vmem>>, vector<32x32xf32>
    %cst = arith.constant dense<0.000000e+00> : vector<8x32xf32>
    %3 = tpu.matmul %1, %2, %cst {dimension_numbers = #tpu.dot_dimension_numbers<[1], [0], [0], [1], [0, 0, 1, 1], [], []>} : vector<8x32xf32>, vector<32x32xf32>, vector<8x32xf32> -> vector<8x32xf32>
    %c0_4 = arith.constant 0 : index
    %c0_5 = arith.constant 0 : index
    %4 = vector.load %arg3[%c0_4, %c0_5] : memref<1x32xf32, #tpu.memory_space<vmem>>, vector<1x32xf32>
    %5 = vector.broadcast %4 : vector<1x32xf32> to vector<8x32xf32>
    %6 = arith.addf %3, %5 : vector<8x32xf32>
    %cst_6 = arith.constant 5.000000e-01 : f32
    %7 = vector.broadcast %cst_6 : f32 to vector<8x32xf32>
    %8 = arith.mulf %7, %6 : vector<8x32xf32>
    %cst_7 = arith.constant 0.707106769 : f32
    %9 = vector.broadcast %cst_7 : f32 to vector<8x32xf32>
    %10 = arith.mulf %6, %9 : vector<8x32xf32>
    %11 = math.erf %10 : vector<8x32xf32>
    %cst_8 = arith.constant 1.000000e+00 : f32
    %12 = vector.broadcast %cst_8 : f32 to vector<8x32xf32>
    %13 = arith.addf %12, %11 : vector<8x32xf32>
    %14 = arith.mulf %8, %13 : vector<8x32xf32>
    %c0_9 = arith.constant 0 : index
    %c0_10 = arith.constant 0 : index
    %15 = vector.load %arg4[%c0_9, %c0_10] : memref<1x32xf32, #tpu.memory_space<vmem>>, vector<1x32xf32>
    %16 = vector.broadcast %15 : vector<1x32xf32> to vector<8x32xf32>
    %17 = arith.mulf %14, %16 : vector<8x32xf32>
    %cst_11 = arith.constant dense<0.000000e+00> : vector<8xf32>
    %18 = vector.multi_reduction <add>, %17, %cst_11 [1] : vector<8x32xf32> to vector<8xf32>
    %19 = vector.shape_cast %18 : vector<8xf32> to vector<8x1xf32>
    %c0_12 = arith.constant 0 : index
    %c0_13 = arith.constant 0 : index
    %20 = memref.load %arg5[%c0_12, %c0_13] : memref<1x1xf32, #tpu.memory_space<smem>>
    %21 = vector.broadcast %20 : f32 to vector<8x1xf32>
    %22 = arith.addf %19, %21 : vector<8x1xf32>
    %c0_14 = arith.constant 0 : index
    %c0_15 = arith.constant 0 : index
    %23 = vector.load %arg6[%c0_14, %c0_15] : memref<8x1xf32, #tpu.memory_space<vmem>>, vector<8x1xf32>
    tpu.vector_store %arg6[%c0_14, %c0_15], %22 {strides = array<i32>} : memref<8x1xf32, #tpu.memory_space<vmem>>, vector<8x1xf32>,
    return
  }
  func.func @transform_0(%arg0: i32) -> (i32, i32, i32) {
    %c0_i32 = arith.constant 0 : i32
    %c0_i32_0 = arith.constant 0 : i32
    %c0_i32_1 = arith.constant 0 : i32
    return %c0_i32, %arg0, %c0_i32_0 : i32, i32, i32
  }
  func.func @transform_1(%arg0: i32) -> (i32, i32) {
    %c0_i32 = arith.constant 0 : i32
    %c0_i32_0 = arith.constant 0 : i32
    %c0_i32_1 = arith.constant 0 : i32
    return %c0_i32, %c0_i32_0 : i32, i32
  }
  func.func @transform_2(%arg0: i32) -> (i32, i32) {
    %c0_i32 = arith.constant 0 : i32
    %c0_i32_0 = arith.constant 0 : i32
    %c0_i32_1 = arith.constant 0 : i32
    return %c0_i32, %c0_i32_0 : i32, i32
  }
  func.func @transform_3(%arg0: i32) -> (i32, i32) {
    %c0_i32 = arith.constant 0 : i32
    %c0_i32_0 = arith.constant 0 : i32
    %c0_i32_1 = arith.constant 0 : i32
    return %c0_i32, %c0_i32_0 : i32, i32
  }
  func.func @transform_4(%arg0: i32) -> (i32, i32) {
    %c0_i32 = arith.constant 0 : i32
    %c0_i32_0 = arith.constant 0 : i32
    %c0_i32_1 = arith.constant 0 : i32
    return %c0_i32, %c0_i32_0 : i32, i32
  }
  func.func @transform_5(%arg0: i32) -> (i32, i32) {
    %c0_i32 = arith.constant 0 : i32
    %c0_i32_0 = arith.constant 0 : i32
    return %arg0, %c0_i32 : i32, i32
  }
}

</mosaic_0001>

<llo_original>
// kernel: tpu_custom_call.1
$region0: #{tpu_custom_call.1}
  #allocation0 [shape = 'u32[]', space=smem, size = 0x4, offset = 0x4, fixed_abs, tag = 'smem constant byte address 0x4 - core index']
  #allocation1 [shape = 'u32[144,128]{1,0:T(1,128)}', space=vmem, size = 0x12000, scoped, tag = 'internal scratch']
  #allocation2 [shape = 'f32[1,1]{1,0:T(1,128)S(6)}', space=smem, size = 0x200, scoped, tag = 'scoped memory for tpu_custom_call.1']
  %s0 = inlined_call_operand.hbm [shape: f32[1,8,32], index: 0, kind: input, shape index: {}]
  %s1 = inlined_call_operand.hbm [shape: f32[32,32], index: 1, kind: input, shape index: {}]
  %s2 = inlined_call_operand.vmem [shape: f32[1,32], index: 2, kind: input, shape index: {}]
  %s3 = inlined_call_operand.vmem [shape: f32[1,32], index: 3, kind: input, shape index: {}]
  %s4 = inlined_call_operand.<no memory space> [shape: f32[1,1], index: 4, kind: input, shape index: {}]
  %s5 = inlined_call_operand.vmem [shape: f32[8,1], index: 5, kind: output, shape index: {}]
  %s6 = sld [smem:[#allocation0]]
  $region38: #{tpu_custom_call.1} parent=0
    _
  %s8 = ssub.s32 1, %s6
  %s9 = scalar_select 0, %s8, %s6
  %10 = sst [smem:[#allocation2]] %s4
  $region1: #{tpu_custom_call.1} parent=0
    #allocation3 [shape = 'u8[4096]{0}', space=vmem, size = 0x1000, scoped, tag = 'input window, operand 0, single buffered']
    #allocation4 [shape = 's32[1]{0}', space=sflag, size = 0x4, scoped, tag = 'scoped memory for tpu_custom_call.1']
    #allocation5 [shape = 'u8[16384]{0}', space=vmem, size = 0x4000, scoped, tag = 'input window, operand 1, single buffered']
    #allocation6 [shape = 's32[1]{0}', space=sflag, size = 0x4, scoped, tag = 'scoped memory for tpu_custom_call.1']
    %11 = vsyncpa [#allocation4], 0
    %12 = vsyncpa [#allocation6], 0
    // Predicated region
    $region2: #{tpu_custom_call.1} parent=1 // pred_check
      _
    $region3: #{tpu_custom_call.1} parent=1 // pred_check_branch
      %14 = sbr.rel (0) target = $region5
    $region4: #{tpu_custom_call.1} parent=1 // pred_region
      %s16 = ssub.s32 128, 128
      %17 = vsyncadd [#allocation4], %s16
      %s19 = sshll.u32 [#allocation3], 4
      %s20 = int_to_ptr.vmem [resolvable:$true] %s19
      %22 = dma.hbm_to_vmem [thread:$0]  %s0, 128, %s20, [#allocation4]
    $region5: #{tpu_custom_call.1} parent=1 // pred_fallthru
      _
    // Predicated region
    $region6: #{tpu_custom_call.1} parent=1 // pred_check
      _
    $region7: #{tpu_custom_call.1} parent=1 // pred_check_branch
      %24 = sbr.rel (0) target = $region9
    $region8: #{tpu_custom_call.1} parent=1 // pred_region
      %s26 = ssub.s32 512, 512
      %27 = vsyncadd [#allocation6], %s26
      %s28 = sshll.u32 [#allocation5], 4
      %s29 = int_to_ptr.vmem [resolvable:$true] %s28
      %34 = dma.hbm_to_vmem [thread:$0]  %s1, 512, %s29, [#allocation6], 128, 128, 8
    $region9: #{tpu_custom_call.1} parent=1 // pred_fallthru
      _
    // Predicated region
    $region10: #{tpu_custom_call.1} parent=1 // pred_check
      _
    $region11: #{tpu_custom_call.1} parent=1 // pred_check_branch
      %36 = sbr.rel (0) target = $region13
    $region12: #{tpu_custom_call.1} parent=1 // pred_region
      _
    $region13: #{tpu_custom_call.1} parent=1 // pred_fallthru
      _
    // Predicated region
    $region14: #{tpu_custom_call.1} parent=1 // pred_check
      _
    $region15: #{tpu_custom_call.1} parent=1 // pred_check_branch
      %38 = sbr.rel (0) target = $region17
    $region16: #{tpu_custom_call.1} parent=1 // pred_region
      _
    $region17: #{tpu_custom_call.1} parent=1 // pred_fallthru
      _
    // Predicated region
    $region18: #{tpu_custom_call.1} parent=1 // pred_check
      _
    $region19: #{tpu_custom_call.1} parent=1 // pred_check_branch
      %40 = sbr.rel (0) target = $region21
    $region20: #{tpu_custom_call.1} parent=1 // pred_region
      _
    $region21: #{tpu_custom_call.1} parent=1 // pred_fallthru
      _
    // Predicated region
    $region22: #{tpu_custom_call.1} parent=1 // pred_check
      _
    $region23: #{tpu_custom_call.1} parent=1 // pred_check_branch
      %42 = sbr.rel (0) target = $region25
    $region24: #{tpu_custom_call.1} parent=1 // pred_region
      %43 = dma.done [#allocation4], 128
    $region25: #{tpu_custom_call.1} parent=1 // pred_fallthru
      _
    // Predicated region
    $region26: #{tpu_custom_call.1} parent=1 // pred_check
      _
    $region27: #{tpu_custom_call.1} parent=1 // pred_check_branch
      %45 = sbr.rel (0) target = $region29
    $region28: #{tpu_custom_call.1} parent=1 // pred_region
      %46 = dma.done [#allocation6], 512
    $region29: #{tpu_custom_call.1} parent=1 // pred_fallthru
      _
    %v47 = vld [vmem:[#allocation3] sm:$0xff]
    %v48 = vld [vmem:[#allocation5] sm:$0xff]
    %v49 = vld [vmem:[#allocation5 + $0x8] sm:$0xff]
    %v50 = vld [vmem:[#allocation5 + $0x10] sm:$0xff]
    %v51 = vld [vmem:[#allocation5 + $0x18] sm:$0xff]
    %v52 = vld [vmem:[%s2] sm:$0x1]
    %v54 = vlaneseq
    %v55 = vshrl.u32 %v54, 7
    %v56 = vsub.s32 0, %v55
    %v57 = vrot.slane %v52, %v56
    %vm59 = vcmask 261120
    %v61 = vsel %vm59, %v47, 0
    %63 = vmatprep.subr.mxu0 0.0
    %64 = vmatpush1.msra.mxu0 %v48
    %65 = vmatprep.subr.mxu0 0.0
    %66 = vmatpush1.msra.mxu0 %v49
    %67 = vmatprep.subr.mxu0 0.0
    %68 = vmatpush1.msra.mxu0 %v50
    %69 = vmatprep.subr.mxu0 0.0
    %70 = vmatpush1.msra.mxu0 %v51
    %71 = vmatprep.subr.mxu0 0.0
    %72 = vmatpush1.msra.mxu0 0.0
    %73 = vmatprep.subr.mxu0 0.0
    %74 = vmatpush1.msra.mxu0 0.0
    %75 = vmatprep.subr.mxu0 0.0
    %76 = vmatpush1.msra.mxu0 0.0
    %77 = vmatprep.subr.mxu0 0.0
    %78 = vmatpush1.msra.mxu0 0.0
    %79 = vmatprep.subr.mxu0 0.0
    %80 = vmatpush1.msra.mxu0 0.0
    %81 = vmatprep.subr.mxu0 0.0
    %82 = vmatpush1.msra.mxu0 0.0
    %83 = vmatprep.subr.mxu0 0.0
    %84 = vmatpush1.msra.mxu0 0.0
    %85 = vmatprep.subr.mxu0 0.0
    %86 = vmatpush1.msra.mxu0 0.0
    %87 = vmatprep.subr.mxu0 0.0
    %88 = vmatpush1.msra.mxu0 0.0
    %89 = vmatprep.subr.mxu0 0.0
    %90 = vmatpush1.msra.mxu0 0.0
    %91 = vmatprep.subr.mxu0 0.0
    %92 = vmatpush1.msra.mxu0 0.0
    %93 = vmatprep.subr.mxu0 0.0
    %94 = vmatpush1.msra.mxu0 0.0
    %95 = vmatprep.subr.mxu0 0.0
    %96 = vmatpush1.msra.mxu0 0.0
    %97 = vmatprep.subr.mxu0 0.0
    %98 = vmatpush1.msra.mxu0 0.0
    %99 = vmatprep.subr.mxu0 0.0
    %100 = vmatpush1.msra.mxu0 0.0
    %101 = vmatprep.subr.mxu0 0.0
    %102 = vmatpush1.msra.mxu0 0.0
    %103 = vmatprep.subr.mxu0 0.0
    %104 = vmatpush1.msra.mxu0 0.0
    %105 = vmatprep.subr.mxu0 0.0
    %106 = vmatpush1.msra.mxu0 0.0
    %107 = vmatprep.subr.mxu0 0.0
    %108 = vmatpush1.msra.mxu0 0.0
    %109 = vmatprep.subr.mxu0 0.0
    %110 = vmatpush1.msra.mxu0 0.0
    %111 = vmatprep.subr.mxu0 0.0
    %112 = vmatpush1.msra.mxu0 0.0
    %113 = vmatprep.subr.mxu0 0.0
    %114 = vmatpush1.msra.mxu0 0.0
    %115 = vmatprep.subr.mxu0 0.0
    %116 = vmatpush1.msra.mxu0 0.0
    %117 = vmatprep.subr.mxu0 0.0
    %118 = vmatpush1.msra.mxu0 0.0
    %119 = vmatprep.subr.mxu0 0.0
    %120 = vmatpush1.msra.mxu0 0.0
    %121 = vmatprep.subr.mxu0 0.0
    %122 = vmatpush1.msra.mxu0 0.0
    %123 = vmatprep.subr.mxu0 0.0
    %124 = vmatpush1.msra.mxu0 0.0
    %125 = vmatprep.subr.mxu0 0.0
    %126 = vmatpush1.msra.mxu0 0.0
    %127 = vmatprep.mubr.f32.mxu0 0.0
    %128 = vmatmul.mubr.f32.gmra.mrb[0].mxu0 %v61
    %v129 = vpop.f32.mrb[0].mxu0
    %v130 = vadd.f32 %v57, %v129
    %v131 = vpop.f32.mrb[0].mxu0
    %132 = vdwg.mxu0
    %v133 = vmul.f32 %v130, 0.5
    %v134 = vmul.f32 %v130, 0.70710677
    %v135 = verf.f32.pop %v134
    %v136 = vadd.f32 %v135, 1.0
    %v137 = vmul.f32 %v133, %v136
    %v138 = vld [vmem:[%s3] sm:$0x1]
    %v140 = vlaneseq
    %v141 = vshrl.u32 %v140, 7
    %v142 = vsub.s32 0, %v141
    %v143 = vrot.slane %v138, %v142
    %v145 = vmul.f32 %v137, %v143
    %v146 = vsel %vm59, %v145, 0.0
    %147 = vadd.xlane.f32.xlu0 %v146
    %v148 = vpop.xlane.xlu0 %147
    %s149 = sld [smem:[#allocation2]]
    %v150 = vstv %s149
    %v151 = vadd.f32 %v148, %v150
    %vm152 = vcmask 7168
    %153 = vst.msk [vmem:[%s5] sm:$0xff] %vm152, %v151
    // Predicated region
    $region30: #{tpu_custom_call.1} parent=1 // pred_check
      _
    $region31: #{tpu_custom_call.1} parent=1 // pred_check_branch
      %155 = sbr.rel (0) target = $region33
    $region32: #{tpu_custom_call.1} parent=1 // pred_region
      _
    $region33: #{tpu_custom_call.1} parent=1 // pred_fallthru
      _
    // Predicated region
    $region34: #{tpu_custom_call.1} parent=1 // pred_check
      _
    $region35: #{tpu_custom_call.1} parent=1 // pred_check_branch
      %157 = sbr.rel (0) target = $region37
    $region36: #{tpu_custom_call.1} parent=1 // pred_region
      _
    $region37: #{tpu_custom_call.1} parent=1 // pred_fallthru
      _
    %158 = vsyncpa [#allocation4], 1
    %159 = vsyncpa [#allocation6], 1

</llo_original>
